<compile_context>
chip_gen: v7x
topology: tpu7x:2x2x1
jax: 0.10.0
libtpu: 0.0.40
codegen_flags: <defaults>
</compile_context>

<pallas_src>
import functools
import math

import jax
import jax.numpy as jnp
from jax.experimental import pallas as pl
from jax.experimental.pallas import tpu as pltpu


_VPU_CHUNK = 1024        # lanes per chunk in the small-C VPU path (bounds live vregs)
_MAX_TILE_LANES = 32768  # cap on lanes moved per grid step


def _attnmap_kernel(x_ref, w1_ref, b1_ref, w2_ref, b2_ref, o_ref, *,
                    b_tile, use_mxu, mxu_bf16):
    """x_ref/o_ref: (b_tile, C, T) slab; w*: (C, C) in (out, in); b*: (C, 1)."""
    C = x_ref.shape[1]
    T = x_ref.shape[2]

    b1 = b1_ref[...].astype(jnp.float32)            # (C, 1)
    b2 = b2_ref[...].astype(jnp.float32)

    if use_mxu:
        # MXU path.  Optionally push f32 operands to bf16 (f32 accumulation):
        # the MXU is bf16-native on v5e/v6e/v7x; f32 x f32 is a multi-pass matmul.
        op_dtype = x_ref.dtype
        if mxu_bf16 and op_dtype == jnp.float32:
            op_dtype = jnp.bfloat16
        w1 = w1_ref[...].astype(op_dtype)
        w2 = w2_ref[...].astype(op_dtype)
        for bi in range(b_tile):                    # static unroll over fused batch
            xb = x_ref[bi].astype(op_dtype)         # (C, T)
            h = jnp.dot(w1, xb, preferred_element_type=jnp.float32) + b1
            h = h * jax.nn.sigmoid(h)               # SiLU in f32 (sigmoid -> EUP)
            y = jnp.dot(w2, h.astype(op_dtype),
                        preferred_element_type=jnp.float32) + b2
            o_ref[bi] = y.astype(o_ref.dtype)
    else:
        # Small C: a (C,C)@(C,T) matmul leaves the MXU ~idle; unroll the channel
        # contraction as broadcast FMAs on the VPU.  The T axis is processed in
        # lane chunks so the f32 working set (xc, acc, hc) stays register-sized
        # instead of spilling for large tiles.
        w1 = w1_ref[...].astype(jnp.float32)
        w2 = w2_ref[...].astype(jnp.float32)
        for bi in range(b_tile):
            xb = x_ref[bi]                          # (C, T), input dtype
            for c0 in range(0, T, _VPU_CHUNK):
                csz = min(_VPU_CHUNK, T - c0)
                xc = xb[:, c0:c0 + csz].astype(jnp.float32)      # (C, csz)
                acc = w1[:, 0:1] * xc[0:1, :] + b1
                for k in range(1, C):
                    acc = acc + w1[:, k:k + 1] * xc[k:k + 1, :]
                hc = acc * jax.nn.sigmoid(acc)                   # SiLU
                acc = w2[:, 0:1] * hc[0:1, :] + b2
                for k in range(1, C):
                    acc = acc + w2[:, k:k + 1] * hc[k:k + 1, :]
                o_ref[bi, :, c0:c0 + csz] = acc.astype(o_ref.dtype)


def _vmem_capacity_bytes():
    try:
        info = pltpu.get_tpu_info()
        cap = getattr(info, "vmem_capacity_bytes", None)
        if cap:
            return int(cap)
    except Exception:
        pass
    return 64 * 1024 * 1024     # conservative fallback: v7x per-TensorCore VMEM


def _round_down(x, m):
    return (x // m) * m


def _choose_tiling(B, C, S, x_itemsize, w_itemsize, lane_budget_bytes):
    """Pick (b_tile, tile_pix) so the resident VMEM footprint fits the budget.

    Counts: double-buffered x + out slabs, ~3 f32 intermediates of (C, lanes),
    and the double-buffered constant weights/biases.
    """
    fixed = 2 * 2 * C * C * w_itemsize + 2 * 2 * C * w_itemsize   # w1,w2,b1,b2 (dbuf)
    per_lane = C * (4 * x_itemsize + 3 * 4)
    avail = max(lane_budget_bytes - fixed, per_lane * 128)
    max_lanes = int(min(max(avail // per_lane, 128), _MAX_TILE_LANES))

    if S <= max_lanes:
        tile_pix = S
        # Fuse several batch images per grid step when the spatial extent is
        # small, to amortize the per-step pipeline overhead with larger DMAs.
        b_tile = int(min(B, max(1, max_lanes // max(S, 1)), 8))
        if B >= 2 and b_tile >= B:
            # Keep >= 2 grid blocks so v7x's second TensorCore isn't idle.
            b_tile = max(1, B // 2)
        if B == 1 and S >= 256:
            # Single image: split the spatial axis instead (>= 2 blocks).
            half = ((S + 1) // 2 + 127) // 128 * 128
            if half < S:
                tile_pix = half
                b_tile = 1
    else:
        b_tile = 1
        tile_pix = max(128, _round_down(max_lanes, 128))
    return b_tile, tile_pix


def attn_map_forward(x_nchw, w1, b1, w2, b2, *, mxu_bf16=False):
    """AttnMap forward: Conv2d(1x1) -> SiLU -> Conv2d(1x1) on NCHW input.

    x_nchw: (B, C, H, W).  w1, w2: (C_out, C_in) — PyTorch conv weight with the
    trailing 1x1 spatial dims squeezed.  b1, b2: (C,).
    """
    B, C, H, W = x_nchw.shape
    S = H * W
    x3 = x_nchw.reshape(B, C, S)            # free reshape: no transpose, no copy
    x_itemsize = jnp.dtype(x_nchw.dtype).itemsize
    w_itemsize = jnp.dtype(w1.dtype).itemsize

    vmem_cap = _vmem_capacity_bytes()       # 128 MiB on v5e/v6e, 64 MiB on v7x
    vmem_limit = int(vmem_cap * 0.85)       # leave headroom for compiler scratch
    lane_budget = int(vmem_cap * 0.60)      # budget for our tiles, below the limit

    b_tile, tile_pix = _choose_tiling(B, C, S, x_itemsize, w_itemsize, lane_budget)
    grid = (pl.cdiv(B, b_tile), pl.cdiv(S, tile_pix))

    b1_col = b1.reshape(C, 1)
    b2_col = b2.reshape(C, 1)

    use_mxu = C >= 8    # the 256-wide MXU on v6e/v7x makes even C=8..16 ~free
    kernel = functools.partial(_attnmap_kernel, b_tile=b_tile,
                               use_mxu=use_mxu, mxu_bf16=mxu_bf16)

    # TODO(synk): for very large C, single-buffer the constant W1/W2 operands
    # (pipeline_mode=pl.Buffered(1) or a one-shot VMEM scratch copy) so the
    # double-buffered weights don't dominate VMEM on v7x.
    out = pl.pallas_call(
        kernel,
        out_shape=jax.ShapeDtypeStruct((B, C, S), x_nchw.dtype),
        grid_spec=pltpu.PrefetchScalarGridSpec(
            num_scalar_prefetch=0,
            grid=grid,
            in_specs=[
                pl.BlockSpec((b_tile, C, tile_pix), lambda b, s: (b, 0, s)),
                pl.BlockSpec((C, C), lambda b, s: (0, 0)),
                pl.BlockSpec((C, 1), lambda b, s: (0, 0)),
                pl.BlockSpec((C, C), lambda b, s: (0, 0)),
                pl.BlockSpec((C, 1), lambda b, s: (0, 0)),
            ],
            out_specs=pl.BlockSpec((b_tile, C, tile_pix), lambda b, s: (b, 0, s)),
        ),
        compiler_params=pltpu.CompilerParams(
            dimension_semantics=("parallel", "parallel"),
            vmem_limit_bytes=vmem_limit,
        ),
    )(x3, w1, b1_col, w2, b2_col)

    return out.reshape(B, C, H, W)


def init_params(key, dim, dtype=jnp.float32):
    """Deterministic init matching PyTorch Conv2d default:
    weights/bias ~ U(-1/sqrt(fan_in), 1/sqrt(fan_in)) with fan_in = dim*1*1.
    Weights are stored (out, in) — PyTorch's conv layout with 1x1 squeezed."""
    k1, k2, k3, k4 = jax.random.split(key, 4)
    bound = 1.0 / math.sqrt(dim)
    w1 = jax.random.uniform(k1, (dim, dim), dtype, -bound, bound)
    b1 = jax.random.uniform(k2, (dim,), dtype, -bound, bound)
    w2 = jax.random.uniform(k3, (dim, dim), dtype, -bound, bound)
    b2 = jax.random.uniform(k4, (dim,), dtype, -bound, bound)
    return w1, b1, w2, b2


def reference(x_nchw, w1, b1, w2, b2):
    h = jnp.einsum("oc,bchw->bohw", w1, x_nchw) + b1[None, :, None, None]
    h = h * jax.nn.sigmoid(h)
    y = jnp.einsum("oc,bchw->bohw", w2, h) + b2[None, :, None, None]
    return y


if __name__ == "__main__":
    key = jax.random.PRNGKey(0)
    kx, kp = jax.random.split(key)

    B, dim, H, W = 2, 4, 16, 16
    x = jax.random.normal(kx, (B, dim, H, W), jnp.float32)
    w1, b1, w2, b2 = init_params(kp, dim)

    out = attn_map_forward(x, w1, b1, w2, b2)
    out = jax.block_until_ready(out)

    ref = reference(x, w1, b1, w2, b2)
    assert out.shape == (B, dim, H, W)
    assert jnp.allclose(out, ref, atol=1e-5, rtol=1e-5)

    print("KERNEL_OK")
</pallas_src>

<mosaic_0001>
module attributes {stable_mosaic.version = 11 : i64} {
  func.func @_attnmap_kernel(%arg0: i32, %arg1: i32, %arg2: memref<1x4x256xf32, #tpu.memory_space<vmem>>, %arg3: memref<4x4xf32, #tpu.memory_space<vmem>>, %arg4: memref<4x1xf32, #tpu.memory_space<vmem>>, %arg5: memref<4x4xf32, #tpu.memory_space<vmem>>, %arg6: memref<4x1xf32, #tpu.memory_space<vmem>>, %arg7: memref<1x4x256xf32, #tpu.memory_space<vmem>>) attributes {dimension_semantics = [#tpu.dimension_semantics<parallel>, #tpu.dimension_semantics<parallel>], iteration_bounds = array<i64: 2, 1>, scalar_prefetch = 0 : i64, scratch_operands = 0 : i64, tpu.core_type = #tpu.core_type<tc>, window_params = [{transform_indices = @transform_0, window_bounds = array<i64: 1, 4, 256>}, {pipeline_mode = #tpu.pipeline_mode<synchronous>, transform_indices = @transform_1, window_bounds = array<i64: 4, 4>}, {pipeline_mode = #tpu.pipeline_mode<synchronous>, transform_indices = @transform_2, window_bounds = array<i64: 4, 1>}, {pipeline_mode = #tpu.pipeline_mode<synchronous>, transform_indices = @transform_3, window_bounds = array<i64: 4, 4>}, {pipeline_mode = #tpu.pipeline_mode<synchronous>, transform_indices = @transform_4, window_bounds = array<i64: 4, 1>}, {transform_indices = @transform_5, window_bounds = array<i64: 1, 4, 256>}]} {
    %c0 = arith.constant 0 : index
    %c0_0 = arith.constant 0 : index
    %0 = vector.load %arg4[%c0, %c0_0] : memref<4x1xf32, #tpu.memory_space<vmem>>, vector<4x1xf32>
    %c0_1 = arith.constant 0 : index
    %c0_2 = arith.constant 0 : index
    %1 = vector.load %arg6[%c0_1, %c0_2] : memref<4x1xf32, #tpu.memory_space<vmem>>, vector<4x1xf32>
    %c0_3 = arith.constant 0 : index
    %c0_4 = arith.constant 0 : index
    %2 = vector.load %arg3[%c0_3, %c0_4] : memref<4x4xf32, #tpu.memory_space<vmem>>, vector<4x4xf32>
    %c0_5 = arith.constant 0 : index
    %c0_6 = arith.constant 0 : index
    %3 = vector.load %arg5[%c0_5, %c0_6] : memref<4x4xf32, #tpu.memory_space<vmem>>, vector<4x4xf32>
    %c0_7 = arith.constant 0 : index
    %c0_8 = arith.constant 0 : index
    %c0_9 = arith.constant 0 : index
    %4 = vector.load %arg2[%c0_7, %c0_8, %c0_9] : memref<1x4x256xf32, #tpu.memory_space<vmem>>, vector<1x4x256xf32>
    %5 = vector.shape_cast %4 : vector<1x4x256xf32> to vector<4x256xf32>
    %6 = vector.extract_strided_slice %2 {offsets = [0, 0], sizes = [4, 1], strides = [1, 1]} : vector<4x4xf32> to vector<4x1xf32>
    %7 = vector.extract_strided_slice %5 {offsets = [0, 0], sizes = [1, 256], strides = [1, 1]} : vector<4x256xf32> to vector<1x256xf32>
    %8 = vector.broadcast %6 : vector<4x1xf32> to vector<4x256xf32>
    %9 = vector.broadcast %7 : vector<1x256xf32> to vector<4x256xf32>
    %10 = arith.mulf %8, %9 : vector<4x256xf32>
    %11 = vector.broadcast %0 : vector<4x1xf32> to vector<4x256xf32>
    %12 = arith.addf %10, %11 : vector<4x256xf32>
    %13 = vector.extract_strided_slice %2 {offsets = [0, 1], sizes = [4, 1], strides = [1, 1]} : vector<4x4xf32> to vector<4x1xf32>
    %14 = vector.extract_strided_slice %5 {offsets = [1, 0], sizes = [1, 256], strides = [1, 1]} : vector<4x256xf32> to vector<1x256xf32>
    %15 = vector.broadcast %13 : vector<4x1xf32> to vector<4x256xf32>
    %16 = vector.broadcast %14 : vector<1x256xf32> to vector<4x256xf32>
    %17 = arith.mulf %15, %16 : vector<4x256xf32>
    %18 = arith.addf %12, %17 : vector<4x256xf32>
    %19 = vector.extract_strided_slice %2 {offsets = [0, 2], sizes = [4, 1], strides = [1, 1]} : vector<4x4xf32> to vector<4x1xf32>
    %20 = vector.extract_strided_slice %5 {offsets = [2, 0], sizes = [1, 256], strides = [1, 1]} : vector<4x256xf32> to vector<1x256xf32>
    %21 = vector.broadcast %19 : vector<4x1xf32> to vector<4x256xf32>
    %22 = vector.broadcast %20 : vector<1x256xf32> to vector<4x256xf32>
    %23 = arith.mulf %21, %22 : vector<4x256xf32>
    %24 = arith.addf %18, %23 : vector<4x256xf32>
    %25 = vector.extract_strided_slice %2 {offsets = [0, 3], sizes = [4, 1], strides = [1, 1]} : vector<4x4xf32> to vector<4x1xf32>
    %26 = vector.extract_strided_slice %5 {offsets = [3, 0], sizes = [1, 256], strides = [1, 1]} : vector<4x256xf32> to vector<1x256xf32>
    %27 = vector.broadcast %25 : vector<4x1xf32> to vector<4x256xf32>
    %28 = vector.broadcast %26 : vector<1x256xf32> to vector<4x256xf32>
    %29 = arith.mulf %27, %28 : vector<4x256xf32>
    %30 = arith.addf %24, %29 : vector<4x256xf32>
    %31 = arith.negf %30 : vector<4x256xf32>
    %32 = math.exp %31 : vector<4x256xf32>
    %cst = arith.constant 1.000000e+00 : f32
    %33 = vector.broadcast %cst : f32 to vector<4x256xf32>
    %34 = arith.addf %33, %32 : vector<4x256xf32>
    %35 = arith.divf %33, %34 : vector<4x256xf32>
    %36 = arith.mulf %30, %35 : vector<4x256xf32>
    %37 = vector.extract_strided_slice %3 {offsets = [0, 0], sizes = [4, 1], strides = [1, 1]} : vector<4x4xf32> to vector<4x1xf32>
    %38 = vector.extract_strided_slice %36 {offsets = [0, 0], sizes = [1, 256], strides = [1, 1]} : vector<4x256xf32> to vector<1x256xf32>
    %39 = vector.broadcast %37 : vector<4x1xf32> to vector<4x256xf32>
    %40 = vector.broadcast %38 : vector<1x256xf32> to vector<4x256xf32>
    %41 = arith.mulf %39, %40 : vector<4x256xf32>
    %42 = vector.broadcast %1 : vector<4x1xf32> to vector<4x256xf32>
    %43 = arith.addf %41, %42 : vector<4x256xf32>
    %44 = vector.extract_strided_slice %3 {offsets = [0, 1], sizes = [4, 1], strides = [1, 1]} : vector<4x4xf32> to vector<4x1xf32>
    %45 = vector.extract_strided_slice %36 {offsets = [1, 0], sizes = [1, 256], strides = [1, 1]} : vector<4x256xf32> to vector<1x256xf32>
    %46 = vector.broadcast %44 : vector<4x1xf32> to vector<4x256xf32>
    %47 = vector.broadcast %45 : vector<1x256xf32> to vector<4x256xf32>
    %48 = arith.mulf %46, %47 : vector<4x256xf32>
    %49 = arith.addf %43, %48 : vector<4x256xf32>
    %50 = vector.extract_strided_slice %3 {offsets = [0, 2], sizes = [4, 1], strides = [1, 1]} : vector<4x4xf32> to vector<4x1xf32>
    %51 = vector.extract_strided_slice %36 {offsets = [2, 0], sizes = [1, 256], strides = [1, 1]} : vector<4x256xf32> to vector<1x256xf32>
    %52 = vector.broadcast %50 : vector<4x1xf32> to vector<4x256xf32>
    %53 = vector.broadcast %51 : vector<1x256xf32> to vector<4x256xf32>
    %54 = arith.mulf %52, %53 : vector<4x256xf32>
    %55 = arith.addf %49, %54 : vector<4x256xf32>
    %56 = vector.extract_strided_slice %3 {offsets = [0, 3], sizes = [4, 1], strides = [1, 1]} : vector<4x4xf32> to vector<4x1xf32>
    %57 = vector.extract_strided_slice %36 {offsets = [3, 0], sizes = [1, 256], strides = [1, 1]} : vector<4x256xf32> to vector<1x256xf32>
    %58 = vector.broadcast %56 : vector<4x1xf32> to vector<4x256xf32>
    %59 = vector.broadcast %57 : vector<1x256xf32> to vector<4x256xf32>
    %60 = arith.mulf %58, %59 : vector<4x256xf32>
    %61 = arith.addf %55, %60 : vector<4x256xf32>
    %c0_10 = arith.constant 0 : index
    %c0_11 = arith.constant 0 : index
    %c0_12 = arith.constant 0 : index
    %62 = vector.load %arg7[%c0_10, %c0_11, %c0_12] : memref<1x4x256xf32, #tpu.memory_space<vmem>>, vector<1x4x256xf32>
    %63 = vector.shape_cast %62 : vector<1x4x256xf32> to vector<4x256xf32>
    %64 = vector.shape_cast %61 : vector<4x256xf32> to vector<1x4x256xf32>
    tpu.vector_store %arg7[%c0_10, %c0_11, %c0_12], %64 {strides = array<i32>} : memref<1x4x256xf32, #tpu.memory_space<vmem>>, vector<1x4x256xf32>,
    return
  }
  func.func @transform_0(%arg0: i32, %arg1: i32) -> (i32, i32, i32) {
    %c0_i32 = arith.constant 0 : i32
    %c0_i32_0 = arith.constant 0 : i32
    return %arg0, %c0_i32, %arg1 : i32, i32, i32
  }
  func.func @transform_1(%arg0: i32, %arg1: i32) -> (i32, i32) {
    %c0_i32 = arith.constant 0 : i32
    %c0_i32_0 = arith.constant 0 : i32
    %c0_i32_1 = arith.constant 0 : i32
    return %c0_i32, %c0_i32_0 : i32, i32
  }
  func.func @transform_2(%arg0: i32, %arg1: i32) -> (i32, i32) {
    %c0_i32 = arith.constant 0 : i32
    %c0_i32_0 = arith.constant 0 : i32
    %c0_i32_1 = arith.constant 0 : i32
    return %c0_i32, %c0_i32_0 : i32, i32
  }
  func.func @transform_3(%arg0: i32, %arg1: i32) -> (i32, i32) {
    %c0_i32 = arith.constant 0 : i32
    %c0_i32_0 = arith.constant 0 : i32
    %c0_i32_1 = arith.constant 0 : i32
    return %c0_i32, %c0_i32_0 : i32, i32
  }
  func.func @transform_4(%arg0: i32, %arg1: i32) -> (i32, i32) {
    %c0_i32 = arith.constant 0 : i32
    %c0_i32_0 = arith.constant 0 : i32
    %c0_i32_1 = arith.constant 0 : i32
    return %c0_i32, %c0_i32_0 : i32, i32
  }
  func.func @transform_5(%arg0: i32, %arg1: i32) -> (i32, i32, i32) {
    %c0_i32 = arith.constant 0 : i32
    %c0_i32_0 = arith.constant 0 : i32
    return %arg0, %c0_i32, %arg1 : i32, i32, i32
  }
}

</mosaic_0001>

<llo_original>
// kernel: tpu_custom_call.1
$region0: #{tpu_custom_call.1}
  #allocation0 [shape = 'u32[]', space=smem, size = 0x4, offset = 0x4, fixed_abs, tag = 'smem constant byte address 0x4 - core index']
  #allocation1 [shape = 'u32[144,128]{1,0:T(1,128)}', space=vmem, size = 0x12000, scoped, tag = 'internal scratch']
  %s0 = inlined_call_operand.hbm [shape: f32[2,4,256], index: 0, kind: input, shape index: {}]
  %s1 = inlined_call_operand.vmem [shape: f32[4,4], index: 1, kind: input, shape index: {}]
  %s2 = inlined_call_operand.vmem [shape: f32[4,1], index: 2, kind: input, shape index: {}]
  %s3 = inlined_call_operand.vmem [shape: f32[4,4], index: 3, kind: input, shape index: {}]
  %s4 = inlined_call_operand.vmem [shape: f32[4,1], index: 4, kind: input, shape index: {}]
  %s5 = inlined_call_operand.hbm [shape: f32[2,4,256], index: 5, kind: output, shape index: {}]
  %s6 = sld [smem:[#allocation0]]
  $region57: #{tpu_custom_call.1} parent=0
    _
  %s8 = ssub.s32 1, %s6
  %s9 = scalar_select 0, %s8, %s6
  $region1: #{tpu_custom_call.1} parent=0
    #allocation2 [shape = 'u8[8192]{0}', space=vmem, size = 0x2000, scoped, tag = 'input window, operand 0']
    #allocation3 [shape = 's32[2]{0}', space=sflag, size = 0x8, scoped, tag = 'scoped memory for tpu_custom_call.1']
    #allocation4 [shape = 's32[2]{0}', space=sflag, size = 0x8, scoped, tag = 'scoped memory for tpu_custom_call.1']
    #allocation5 [shape = 'u8[8192]{0}', space=vmem, size = 0x2000, scoped, tag = 'output window, operand 0']
    %10 = vsyncpa [#allocation3], 0
    %s11 = scalar_lea.sflag [#allocation3], 1
    %12 = vsyncpa %s11, 0
    %13 = vsyncpa [#allocation4], 0
    %s14 = scalar_lea.sflag [#allocation4], 1
    %15 = vsyncpa %s14, 0
    loop: start=0, step=1, limit=4
    $region2: #{tpu_custom_call.1} parent=1 // loop_pre_header
      _
    $region3: #{tpu_custom_call.1} parent=1 // loop_header
      %s17 = sphi 0, %s21
      %p18 = scmp.ge.s32.totalorder %s17, 4
      %s24 = sphi 0, %s36
      %s25 = sphi 0, %s32
      %s26 = sphi 0, %s24
      %s27 = sphi 0, %s25
      %s28 = sphi 0, %s26
      %s29 = sphi 0, %s27
      %s41 = sphi 0, %s43
      %s44 = sphi 0, %s41
      %s45 = sphi 0, %s44
      %s61 = sphi 0, %s45
      %s65 = sphi 0, %s65
      %s67 = sphi 0, %s65
      %s68 = sphi 0, %s67
      %s82 = sphi 0, %s68
      %s86 = sphi 0, %s86
      %s88 = sphi 0, %s86
      %s89 = sphi 0, %s88
      %s103 = sphi 0, %s89
      %s107 = sphi 0, %s107
      %s109 = sphi 0, %s107
      %s110 = sphi 0, %s109
      %s124 = sphi 0, %s110
      %s128 = sphi 0, %s128
      %s130 = sphi 0, %s128
      %s131 = sphi 0, %s130
      %s145 = sphi 0, %s131
      %s153 = sphi 0, %s155
      %s156 = sphi 0, %s153
      %s157 = sphi 0, %s156
      %s173 = sphi 0, %s157
    $region4: #{tpu_custom_call.1} parent=1 // loop_header_branch
      %20 = sbr.rel (%p18) target = $region8
    $region5: #{tpu_custom_call.1} parent=1 // loop_body
      %s22 = ssub.s32 %s17, 1
      %s23 = ssub.s32 %s17, 2
      %s30 = sadd.s32 1, %s25
      %p31 = scmp.ge.s32.totalorder %s30, 1
      %s32 = scalar_select %p31, 0, %s30
      %s33 = sadd.s32 1, %s24
      %s34 = scalar_select %p31, %s33, %s24
      %p35 = scmp.ge.s32.totalorder %s34, 2
      %s36 = scalar_select %p35, 0, %s34
      %s37 = ssub.s32 %s24, %s36
      %s38 = ssub.s32 %s25, %s32
      %s39 = sor.u32 %s37, %s38
      %p40 = scmp.eq.s32.totalorder %s39, 0
      %s42 = sadd.s32 %s41, 1
      %s43 = scalar_select %p40, %s41, %s42
      %p46 = pneg %p40
      %p47 = scmp.eq.s32.totalorder %s17, 1
      %p48 = por %p46, %p47
      %p49 = scmp.ne.s32.totalorder %s41, %s44
      %p50 = scmp.eq.s32.totalorder %s17, 0
      %p51 = por %p49, %p50
      %p52 = scmp.ne.s32.totalorder %s41, %s44
      %p53 = scmp.eq.s32.totalorder %s22, 1
      %p54 = por %p52, %p53
      %p55 = scmp.ne.s32.totalorder %s44, %s45
      %p56 = scmp.eq.s32.totalorder %s22, 0
      %p57 = por %p55, %p56
      %p58 = scmp.ne.s32.totalorder %s44, %s45
      %p59 = scmp.eq.s32.totalorder %s23, 1
      %p60 = por %p58, %p59
      %p62 = scmp.ne.s32.totalorder %s45, %s61
      %p63 = scmp.eq.s32.totalorder %s23, 0
      %p64 = por %p62, %p63
      %s66 = sadd.s32 %s65, 1
      %p69 = scmp.eq.s32.totalorder %s17, 1
      %p70 = scmp.ne.s32.totalorder %s65, %s67
      %p71 = scmp.eq.s32.totalorder %s17, 0
      %p72 = por %p70, %p71
      %p73 = scmp.ne.s32.totalorder %s65, %s67
      %p74 = scmp.eq.s32.totalorder %s22, 1
      %p75 = por %p73, %p74
      %p76 = scmp.ne.s32.totalorder %s67, %s68
      %p77 = scmp.eq.s32.totalorder %s22, 0
      %p78 = por %p76, %p77
      %p79 = scmp.ne.s32.totalorder %s67, %s68
      %p80 = scmp.eq.s32.totalorder %s23, 1
      %p81 = por %p79, %p80
      %p83 = scmp.ne.s32.totalorder %s68, %s82
      %p84 = scmp.eq.s32.totalorder %s23, 0
      %p85 = por %p83, %p84
      %s87 = sadd.s32 %s86, 1
      %p90 = scmp.eq.s32.totalorder %s17, 1
      %p91 = scmp.ne.s32.totalorder %s86, %s88
      %p92 = scmp.eq.s32.totalorder %s17, 0
      %p93 = por %p91, %p92
      %p94 = scmp.ne.s32.totalorder %s86, %s88
      %p95 = scmp.eq.s32.totalorder %s22, 1
      %p96 = por %p94, %p95
      %p97 = scmp.ne.s32.totalorder %s88, %s89
      %p98 = scmp.eq.s32.totalorder %s22, 0
      %p99 = por %p97, %p98
      %p100 = scmp.ne.s32.totalorder %s88, %s89
      %p101 = scmp.eq.s32.totalorder %s23, 1
      %p102 = por %p100, %p101
      %p104 = scmp.ne.s32.totalorder %s89, %s103
      %p105 = scmp.eq.s32.totalorder %s23, 0
      %p106 = por %p104, %p105
      %s108 = sadd.s32 %s107, 1
      %p111 = scmp.eq.s32.totalorder %s17, 1
      %p112 = scmp.ne.s32.totalorder %s107, %s109
      %p113 = scmp.eq.s32.totalorder %s17, 0
      %p114 = por %p112, %p113
      %p115 = scmp.ne.s32.totalorder %s107, %s109
      %p116 = scmp.eq.s32.totalorder %s22, 1
      %p117 = por %p115, %p116
      %p118 = scmp.ne.s32.totalorder %s109, %s110
      %p119 = scmp.eq.s32.totalorder %s22, 0
      %p120 = por %p118, %p119
      %p121 = scmp.ne.s32.totalorder %s109, %s110
      %p122 = scmp.eq.s32.totalorder %s23, 1
      %p123 = por %p121, %p122
      %p125 = scmp.ne.s32.totalorder %s110, %s124
      %p126 = scmp.eq.s32.totalorder %s23, 0
      %p127 = por %p125, %p126
      %s129 = sadd.s32 %s128, 1
      %p132 = scmp.eq.s32.totalorder %s17, 1
      %p133 = scmp.ne.s32.totalorder %s128, %s130
      %p134 = scmp.eq.s32.totalorder %s17, 0
      %p135 = por %p133, %p134
      %p136 = scmp.ne.s32.totalorder %s128, %s130
      %p137 = scmp.eq.s32.totalorder %s22, 1
      %p138 = por %p136, %p137
      %p139 = scmp.ne.s32.totalorder %s130, %s131
      %p140 = scmp.eq.s32.totalorder %s22, 0
      %p141 = por %p139, %p140
      %p142 = scmp.ne.s32.totalorder %s130, %s131
      %p143 = scmp.eq.s32.totalorder %s23, 1
      %p144 = por %p142, %p143
      %p146 = scmp.ne.s32.totalorder %s131, %s145
      %p147 = scmp.eq.s32.totalorder %s23, 0
      %p148 = por %p146, %p147
      %s149 = ssub.s32 %s24, %s36
      %s150 = ssub.s32 %s25, %s32
      %s151 = sor.u32 %s149, %s150
      %p152 = scmp.eq.s32.totalorder %s151, 0
      %s154 = sadd.s32 %s153, 1
      %s155 = scalar_select %p152, %s153, %s154
      %p158 = pneg %p152
      %p159 = scmp.eq.s32.totalorder %s17, 1
      %p160 = por %p158, %p159
      %p161 = scmp.ne.s32.totalorder %s153, %s156
      %p162 = scmp.eq.s32.totalorder %s17, 0
      %p163 = por %p161, %p162
      %p164 = scmp.ne.s32.totalorder %s153, %s156
      %p165 = scmp.eq.s32.totalorder %s22, 1
      %p166 = por %p164, %p165
      %p167 = scmp.ne.s32.totalorder %s156, %s157
      %p168 = scmp.eq.s32.totalorder %s22, 0
      %p169 = por %p167, %p168
      %p170 = scmp.ne.s32.totalorder %s156, %s157
      %p171 = scmp.eq.s32.totalorder %s23, 1
      %p172 = por %p170, %p171
      %p174 = scmp.ne.s32.totalorder %s157, %s173
      %p175 = scmp.eq.s32.totalorder %s23, 0
      %p176 = por %p174, %p175
      %p177 = scmp.le.s32.totalorder 1, %s17
      %p178 = scmp.lt.s32.totalorder %s17, 3
      %p179 = pnand %p177, %p178
      %p180 = pneg %p179
      // Predicated region
      $region9: #{tpu_custom_call.1} parent=5 // pred_check
        _
      $region10: #{tpu_custom_call.1} parent=5 // pred_check_branch
        %182 = sbr.rel (%p179) target = $region12
      $region11: #{tpu_custom_call.1} parent=5 // pred_region
        %s183 = ssub.s32 %s17, 1
        // Predicated region
        $region13: #{tpu_custom_call.1} parent=11 // pred_check
          %p184 = pneg %p78
        $region14: #{tpu_custom_call.1} parent=11 // pred_check_branch
          %186 = sbr.rel (%p184) target = $region16
        $region15: #{tpu_custom_call.1} parent=11 // pred_region
          _
        $region16: #{tpu_custom_call.1} parent=11 // pred_fallthru
          _
        // Predicated region
        $region17: #{tpu_custom_call.1} parent=11 // pred_check
          %p187 = pneg %p99
        $region18: #{tpu_custom_call.1} parent=11 // pred_check_branch
          %189 = sbr.rel (%p187) target = $region20
        $region19: #{tpu_custom_call.1} parent=11 // pred_region
          _
        $region20: #{tpu_custom_call.1} parent=11 // pred_fallthru
          _
        // Predicated region
        $region21: #{tpu_custom_call.1} parent=11 // pred_check
          %p190 = pneg %p120
        $region22: #{tpu_custom_call.1} parent=11 // pred_check_branch
          %192 = sbr.rel (%p190) target = $region24
        $region23: #{tpu_custom_call.1} parent=11 // pred_region
          _
        $region24: #{tpu_custom_call.1} parent=11 // pred_fallthru
          _
        // Predicated region
        $region25: #{tpu_custom_call.1} parent=11 // pred_check
          %p193 = pneg %p141
        $region26: #{tpu_custom_call.1} parent=11 // pred_check_branch
          %195 = sbr.rel (%p193) target = $region28
        $region27: #{tpu_custom_call.1} parent=11 // pred_region
          _
        $region28: #{tpu_custom_call.1} parent=11 // pred_fallthru
          _
      $region12: #{tpu_custom_call.1} parent=5 // pred_fallthru
        _
      %p196 = scmp.lt.s32.totalorder %s17, 2
      // Predicated region
      $region29: #{tpu_custom_call.1} parent=5 // pred_check
        %p197 = pneg %p196
      $region30: #{tpu_custom_call.1} parent=5 // pred_check_branch
        %199 = sbr.rel (%p197) target = $region32
      $region31: #{tpu_custom_call.1} parent=5 // pred_region
        // Predicated region
        $region33: #{tpu_custom_call.1} parent=31 // pred_check
          %p200 = pneg %p51
        $region34: #{tpu_custom_call.1} parent=31 // pred_check_branch
          %202 = sbr.rel (%p200) target = $region36
        $region35: #{tpu_custom_call.1} parent=31 // pred_region
          %s203 = sand.u32 %s41, 1
          %s204 = scalar_lea.sflag [#allocation3], %s203
          %s205 = sand.u32 %s41, 1
          %s206 = smul.addr %s205, 8
          %s207 = scalar_lea.vmem [#allocation2], %s206
          %s208 = smul.u32 2, %s25
          %s210 = ssub.s32 128, 128
          %211 = vsyncadd %s204, %s210
          %s212 = smul.addr %s24, 2
          %s213 = sadd.s32 %s208, %s212
          %s214 = smul.addr %s213, 64
          %s215 = scalar_lea.hbm %s0, %s214
          %s217 = sshll.u32 %s207, 4
          %s218 = int_to_ptr.vmem [resolvable:$true] %s217
          %220 = dma.hbm_to_vmem [thread:$0]  %s215, 128, %s218, %s204
        $region36: #{tpu_custom_call.1} parent=31 // pred_fallthru
          _
      $region32: #{tpu_custom_call.1} parent=5 // pred_fallthru
        _
      %p221 = scmp.le.s32.totalorder 1, %s17
      %p222 = scmp.lt.s32.totalorder %s17, 3
      %p223 = pnand %p221, %p222
      %p224 = pneg %p223
      // Predicated region
      $region37: #{tpu_custom_call.1} parent=5 // pred_check
        _
      $region38: #{tpu_custom_call.1} parent=5 // pred_check_branch
        %226 = sbr.rel (%p223) target = $region40
      $region39: #{tpu_custom_call.1} parent=5 // pred_region
        %s227 = ssub.s32 %s17, 1
        %s228 = sand.u32 %s44, 1
        %s229 = scalar_lea.sflag [#allocation3], %s228
        %s230 = sand.u32 %s44, 1
        %s231 = smul.addr %s230, 8
        %s232 = scalar_lea.vmem [#allocation2], %s231
        // Predicated region
        $region41: #{tpu_custom_call.1} parent=39 // pred_check
          %p233 = pneg %p57
        $region42: #{tpu_custom_call.1} parent=39 // pred_check_branch
          %235 = sbr.rel (%p233) target = $region44
        $region43: #{tpu_custom_call.1} parent=39 // pred_region
          %236 = dma.done %s229, 128
        $region44: #{tpu_custom_call.1} parent=39 // pred_fallthru
          _
        %s237 = sand.u32 %s44, 1
        %s238 = scalar_lea.sflag [#allocation3], %s237
        %s239 = sand.u32 %s44, 1
        %s240 = smul.addr %s239, 8
        %s241 = scalar_lea.vmem [#allocation2], %s240
        %p242 = pneg %p57
        %p243 = pneg %p54
        %p244 = pneg %p78
        %p245 = pneg %p75
        %p246 = pneg %p99
        %p247 = pneg %p96
        %p248 = pneg %p120
        %p249 = pneg %p117
        %p250 = pneg %p141
        %p251 = pneg %p138
        %p252 = pneg %p169
        %p253 = pneg %p166
        %s254 = sand.u32 %s156, 1
        %s255 = scalar_lea.sflag [#allocation4], %s254
        %s256 = sand.u32 %s156, 1
        %s257 = smul.addr %s256, 8
        %s258 = scalar_lea.vmem [#allocation5], %s257
        %s259 = smul.u32 2, %s27
        %s260 = smul.u32 2, %s27
        %v261 = vld [vmem:[%s2] sm:$0xf]
        %v262 = vld [vmem:[%s4] sm:$0xf]
        %v263 = vld [vmem:[%s1] sm:$0xf]
        %v264 = vld [vmem:[%s3] sm:$0xf]
        %v265 = vld [vmem:[%s232] sm:$0xff]
        %267 = vset.pattern.permute.xlu0 0
        %268 = vperm.xlu0 %267, %v263
        %v269 = vpop.permute.xlu0 %268
        %v272 = vlaneseq
        %v273 = vshrl.u32 %v272, 7
        %v274 = vsub.s32 0, %v273
        %v275 = vrot.slane %v265, %v274
        %v276 = vlaneseq
        %v277 = vshrl.u32 %v276, 7
        %v278 = vsub.s32 4, %v277
        %v279 = vrot.slane %v265, %v278
        %v282 = vlaneseq
        %v283 = vshrl.u32 %v282, 7
        %v284 = vsub.s32 0, %v283
        %v285 = vrot.slane %v275, %v284
        %v286 = vlaneseq
        %v287 = vshrl.u32 %v286, 7
        %v288 = vsub.s32 0, %v287
        %v289 = vrot.slane %v279, %v288
        %v290 = vmul.f32 %v269, %v285
        %v291 = vmul.f32 %v269, %v289
        %293 = vset.pattern.permute.xlu0 0
        %294 = vperm.xlu0 %293, %v261
        %v295 = vpop.permute.xlu0 %294
        %v297 = vadd.f32 %v290, %v295
        %v298 = vadd.f32 %v291, %v295
        %299 = vset.pattern.permute.xlu0 1
        %300 = vperm.xlu0 %299, %v263
        %v301 = vpop.permute.xlu0 %300
        %v303 = vlaneseq
        %v304 = vshrl.u32 %v303, 7
        %v305 = vsub.s32 1, %v304
        %v306 = vrot.slane %v265, %v305
        %v307 = vlaneseq
        %v308 = vshrl.u32 %v307, 7
        %v309 = vsub.s32 5, %v308
        %v310 = vrot.slane %v265, %v309
        %v313 = vlaneseq
        %v314 = vshrl.u32 %v313, 7
        %v315 = vsub.s32 1, %v314
        %v316 = vrot.slane %v306, %v315
        %v317 = vlaneseq
        %v318 = vshrl.u32 %v317, 7
        %v319 = vsub.s32 1, %v318
        %v320 = vrot.slane %v310, %v319
        %v321 = vmul.f32 %v301, %v316
        %v322 = vmul.f32 %v301, %v320
        %v323 = vadd.f32 %v297, %v321
        %v324 = vadd.f32 %v298, %v322
        %325 = vset.pattern.permute.xlu0 2
        %326 = vperm.xlu0 %325, %v263
        %v327 = vpop.permute.xlu0 %326
        %v329 = vlaneseq
        %v330 = vshrl.u32 %v329, 7
        %v331 = vsub.s32 2, %v330
        %v332 = vrot.slane %v265, %v331
        %v333 = vlaneseq
        %v334 = vshrl.u32 %v333, 7
        %v335 = vsub.s32 6, %v334
        %v336 = vrot.slane %v265, %v335
        %v339 = vlaneseq
        %v340 = vshrl.u32 %v339, 7
        %v341 = vsub.s32 2, %v340
        %v342 = vrot.slane %v332, %v341
        %v343 = vlaneseq
        %v344 = vshrl.u32 %v343, 7
        %v345 = vsub.s32 2, %v344
        %v346 = vrot.slane %v336, %v345
        %v347 = vmul.f32 %v327, %v342
        %v348 = vmul.f32 %v327, %v346
        %v349 = vadd.f32 %v323, %v347
        %v350 = vadd.f32 %v324, %v348
        %351 = vset.pattern.permute.xlu0 3
        %352 = vperm.xlu0 %351, %v263
        %v353 = vpop.permute.xlu0 %352
        %v355 = vlaneseq
        %v356 = vshrl.u32 %v355, 7
        %v357 = vsub.s32 3, %v356
        %v358 = vrot.slane %v265, %v357
        %v359 = vlaneseq
        %v360 = vshrl.u32 %v359, 7
        %v361 = vsub.s32 7, %v360
        %v362 = vrot.slane %v265, %v361
        %v365 = vlaneseq
        %v366 = vshrl.u32 %v365, 7
        %v367 = vsub.s32 3, %v366
        %v368 = vrot.slane %v358, %v367
        %v369 = vlaneseq
        %v370 = vshrl.u32 %v369, 7
        %v371 = vsub.s32 3, %v370
        %v372 = vrot.slane %v362, %v371
        %v373 = vmul.f32 %v353, %v368
        %v374 = vmul.f32 %v353, %v372
        %v375 = vadd.f32 %v349, %v373
        %v376 = vadd.f32 %v350, %v374
        %v377 = vxor.u32 %v375, 2147483648
        %v378 = vxor.u32 %v376, 2147483648
        %v379 = vmul.f32 %v377, 1.442695
        %v380 = vpow.pop %v379
        %v381 = vmul.f32 %v378, 1.442695
        %v382 = vpow.pop %v381
        %v383 = vadd.f32 %v380, 1.0
        %v384 = vadd.f32 %v382, 1.0
        %v385 = vrcp.pop %v383
        %v386 = vmul.f32 1.0, %v385
        %v387 = vrcp.pop %v384
        %v388 = vmul.f32 1.0, %v387
        %v389 = vmul.f32 %v375, %v386
        %v390 = vmul.f32 %v376, %v388
        %392 = vset.pattern.permute.xlu0 0
        %393 = vperm.xlu0 %392, %v264
        %v394 = vpop.permute.xlu0 %393
        %v396 = vlaneseq
        %v397 = vshrl.u32 %v396, 7
        %v398 = vsub.s32 0, %v397
        %v399 = vrot.slane %v389, %v398
        %v400 = vlaneseq
        %v401 = vshrl.u32 %v400, 7
        %v402 = vsub.s32 0, %v401
        %v403 = vrot.slane %v390, %v402
        %v404 = vmul.f32 %v394, %v399
        %v405 = vmul.f32 %v394, %v403
        %407 = vset.pattern.permute.xlu0 0
        %408 = vperm.xlu0 %407, %v262
        %v409 = vpop.permute.xlu0 %408
        %v411 = vadd.f32 %v404, %v409
        %v412 = vadd.f32 %v405, %v409
        %413 = vset.pattern.permute.xlu0 1
        %414 = vperm.xlu0 %413, %v264
        %v415 = vpop.permute.xlu0 %414
        %v417 = vlaneseq
        %v418 = vshrl.u32 %v417, 7
        %v419 = vsub.s32 1, %v418
        %v420 = vrot.slane %v389, %v419
        %v421 = vlaneseq
        %v422 = vshrl.u32 %v421, 7
        %v423 = vsub.s32 1, %v422
        %v424 = vrot.slane %v390, %v423
        %v425 = vmul.f32 %v415, %v420
        %v426 = vmul.f32 %v415, %v424
        %v427 = vadd.f32 %v411, %v425
        %v428 = vadd.f32 %v412, %v426
        %429 = vset.pattern.permute.xlu0 2
        %430 = vperm.xlu0 %429, %v264
        %v431 = vpop.permute.xlu0 %430
        %v433 = vlaneseq
        %v434 = vshrl.u32 %v433, 7
        %v435 = vsub.s32 2, %v434
        %v436 = vrot.slane %v389, %v435
        %v437 = vlaneseq
        %v438 = vshrl.u32 %v437, 7
        %v439 = vsub.s32 2, %v438
        %v440 = vrot.slane %v390, %v439
        %v441 = vmul.f32 %v431, %v436
        %v442 = vmul.f32 %v431, %v440
        %v443 = vadd.f32 %v427, %v441
        %v444 = vadd.f32 %v428, %v442
        %445 = vset.pattern.permute.xlu0 3
        %446 = vperm.xlu0 %445, %v264
        %v447 = vpop.permute.xlu0 %446
        %v449 = vlaneseq
        %v450 = vshrl.u32 %v449, 7
        %v451 = vsub.s32 3, %v450
        %v452 = vrot.slane %v389, %v451
        %v453 = vlaneseq
        %v454 = vshrl.u32 %v453, 7
        %v455 = vsub.s32 3, %v454
        %v456 = vrot.slane %v390, %v455
        %v457 = vmul.f32 %v447, %v452
        %v458 = vmul.f32 %v447, %v456
        %v459 = vadd.f32 %v443, %v457
        %v460 = vadd.f32 %v444, %v458
        %v463 = vcombine.low %v459, %v460
        %465 = vst [vmem:[%s258] sm:$0xff] %v463
        %s466 = sand.u32 %s156, 1
        %s467 = scalar_lea.sflag [#allocation4], %s466
        %s468 = sand.u32 %s156, 1
        %s469 = smul.addr %s468, 8
        %s470 = scalar_lea.vmem [#allocation5], %s469
        // Predicated region
        $region45: #{tpu_custom_call.1} parent=39 // pred_check
          %p471 = pneg %p166
        $region46: #{tpu_custom_call.1} parent=39 // pred_check_branch
          %473 = sbr.rel (%p471) target = $region48
        $region47: #{tpu_custom_call.1} parent=39 // pred_region
          %s474 = smul.u32 2, %s27
          %s476 = ssub.s32 128, 128
          %477 = vsyncadd %s467, %s476
          %s478 = smul.addr %s26, 2
          %s479 = sadd.s32 %s474, %s478
          %s480 = smul.addr %s479, 64
          %s481 = scalar_lea.hbm %s5, %s480
          %s483 = sshll.u32 %s470, 4
          %s484 = int_to_ptr.vmem [resolvable:$true] %s483
          %486 = dma.vmem_to_hbm [thread:$0]  %s484, 128, %s481, %s467
        $region48: #{tpu_custom_call.1} parent=39 // pred_fallthru
          _
      $region40: #{tpu_custom_call.1} parent=5 // pred_fallthru
        _
      %p487 = scmp.le.s32.totalorder 2, %s17
      // Predicated region
      $region49: #{tpu_custom_call.1} parent=5 // pred_check
        %p488 = pneg %p487
      $region50: #{tpu_custom_call.1} parent=5 // pred_check_branch
        %490 = sbr.rel (%p488) target = $region52
      $region51: #{tpu_custom_call.1} parent=5 // pred_region
        %s491 = ssub.s32 %s17, 2
        // Predicated region
        $region53: #{tpu_custom_call.1} parent=51 // pred_check
          %p492 = pneg %p172
        $region54: #{tpu_custom_call.1} parent=51 // pred_check_branch
          %494 = sbr.rel (%p492) target = $region56
        $region55: #{tpu_custom_call.1} parent=51 // pred_region
          %s495 = sand.u32 %s157, 1
          %s496 = scalar_lea.sflag [#allocation4], %s495
          %s497 = sand.u32 %s157, 1
          %s498 = smul.addr %s497, 8
          %s499 = scalar_lea.vmem [#allocation5], %s498
          %500 = dma.done %s496, 128
        $region56: #{tpu_custom_call.1} parent=51 // pred_fallthru
          _
      $region52: #{tpu_custom_call.1} parent=5 // pred_fallthru
        _
    $region6: #{tpu_custom_call.1} parent=1 // loop_footer
      %s21 = sadd.s32 1, %s17
    $region7: #{tpu_custom_call.1} parent=1 // loop_footer_branch
      %16 = sbr.rel target = $region3
    $region8: #{tpu_custom_call.1} parent=1 // loop_exit
      _
    %501 = vsyncpa [#allocation3], 1
    %s502 = scalar_lea.sflag [#allocation3], 1
    %503 = vsyncpa %s502, 1
    %504 = vsyncpa [#allocation4], 1
    %s505 = scalar_lea.sflag [#allocation4], 1
    %506 = vsyncpa %s505, 1

</llo_original>
